<compile_context>
chip_gen: v7x
topology: tpu7x:2x2x1
jax: 0.10.0
libtpu: 0.0.40
codegen_flags: <defaults>
</compile_context>

<pallas_src>
import math
from functools import partial

import jax
import jax.numpy as jnp
from jax import lax
from jax.experimental import pallas as pl
from jax.experimental.pallas import tpu as pltpu

_INV_SQRT2 = 1.0 / math.sqrt(2.0)
_TANH_GELU_C = math.sqrt(2.0 / math.pi)


def _round_up(x, m):
    return ((x + m - 1) // m) * m


def _vmem_capacity_bytes():
    """Physical VMEM per TensorCore; conservative fallback if the query fails."""
    try:
        return int(pltpu.get_tpu_info().vmem_capacity_bytes)
    except Exception:
        return 64 << 20  # v7x per-core size: safe lower bound on all chips


def _working_set_bytes(tm, th, dim, itemsize):
    # x / out tiles (double-buffered), both weight slices (double-buffered),
    # f32 accumulator scratch, and f32 h/g activation temporaries.
    x_io = 2 * tm * dim * itemsize
    out_io = 2 * tm * dim * itemsize
    w_io = 2 * (dim * th + th * dim) * itemsize
    acc = tm * dim * 4
    act = 2 * tm * th * 4
    return x_io + out_io + w_io + acc + act


def _pick_tiles(M, dim, hidden, itemsize):
    """Choose (tm, th, working_set_bytes, vmem_cap). th always divides hidden."""
    vmem_cap = _vmem_capacity_bytes()
    small_vmem = vmem_cap <= (96 << 20)        # v7x-like: 64 MiB/TC, 2 TCs/chip
    budget = int(vmem_cap * 0.80)              # headroom for compiler scratch

    sub = max(8, 32 // itemsize)               # sublane multiple: 8 f32 / 16 bf16 / 32 i8
    tm_cap = 512 if small_vmem else 1024       # roofline-driven token-tile targets

    if M >= 2 * tm_cap:
        tm = tm_cap
    elif small_vmem and M > 2 * sub:
        # >=2 M-blocks so the "parallel" grid axis shards across both v7x cores.
        tm = min(tm_cap, _round_up(pl.cdiv(M, 2), sub))
    else:
        tm = max(sub, min(tm_cap, _round_up(M, sub)))

    # Hidden-tile candidates: lane-aligned exact divisors of hidden (multiples
    # of 128; the descending order naturally prefers the larger, MXU-friendly
    # 256-multiples on v6e/v7x), plus the full hidden dim.
    cands = sorted(
        {t for t in range(128, hidden, 128) if hidden % t == 0} | {hidden},
        reverse=True)

    while True:
        for th in cands:
            ws = _working_set_bytes(tm, th, dim, itemsize)
            if ws <= budget:
                return tm, th, ws, vmem_cap
        if tm <= sub:
            break
        tm = max(sub, _round_up(tm // 2, sub))
    th = min(cands)
    return tm, th, _working_set_bytes(tm, th, dim, itemsize), vmem_cap


def _mlp_kernel(x_ref, w1_ref, w2_ref, o_ref, acc_ref, *, gelu_tanh):
    """One (tm, dim) token tile x one th-slice of the hidden dimension.

    x_ref:   (tm, dim)   token tile
    w1_ref:  (dim, th)   fc1 weight slice, pre-transposed to (in, out)
    w2_ref:  (th, dim)   fc2 weight slice, pre-transposed to (in, out)
    o_ref:   (tm, dim)   output tile (written on the last hidden step)
    acc_ref: (tm, dim)   f32 VMEM accumulator, persists across hidden steps
    """
    h_step = pl.program_id(1)

    @pl.when(h_step == 0)
    def _():
        acc_ref[...] = jnp.zeros_like(acc_ref)

    # h = x @ W1t_slice -> (tm, th); f32 accumulation on the MXU (natural A@B).
    h = jnp.dot(x_ref[...], w1_ref[...], preferred_element_type=jnp.float32)

    if gelu_tanh:
        # tanh approximation (EUP path); opt-in, changes numerics vs PyTorch.
        g = 0.5 * h * (1.0 + jnp.tanh(_TANH_GELU_C * (h + 0.044715 * h * h * h)))
    else:
        # Exact GELU (PyTorch nn.GELU default, approximate='none'), in f32.
        g = 0.5 * h * (1.0 + lax.erf(h * jnp.float32(_INV_SQRT2)))

    # acc += g @ W2t_slice -> (tm, dim) (natural A@B).
    acc_ref[...] += jnp.dot(g.astype(w2_ref.dtype), w2_ref[...],
                            preferred_element_type=jnp.float32)

    @pl.when(h_step == pl.num_programs(1) - 1)
    def _():
        o_ref[...] = acc_ref[...].astype(o_ref.dtype)


@partial(jax.jit, static_argnames=("use_bf16_matmul", "gelu_tanh"))
def mlp_pallas(x, w1, w2, *, use_bf16_matmul=False, gelu_tanh=False):
    """x: (batch, seq, dim); w1: (hidden, dim); w2: (dim, hidden) (PyTorch layout).

    Computes fc2(gelu(fc1(x))) with bias-free linears in one fused Pallas call.
    """
    batch, seq, dim = x.shape
    hidden = w1.shape[0]
    M = batch * seq
    out_dtype = x.dtype

    x2d = x.reshape(M, dim)
    # One-time transposes (outside the per-token grid): both in-kernel matmuls
    # become natural A@B and both weight-slice DMAs are contiguous row blocks.
    w1t = jnp.swapaxes(w1, 0, 1)   # (dim, hidden)
    w2t = jnp.swapaxes(w2, 0, 1)   # (hidden, dim)

    if use_bf16_matmul and x2d.dtype == jnp.float32:
        # Opt-in: MXU has no fast f32 path (none at all on v7x); keep f32 accum.
        x2d, w1t, w2t = (a.astype(jnp.bfloat16) for a in (x2d, w1t, w2t))

    itemsize = jnp.dtype(x2d.dtype).itemsize
    tm, th, ws_bytes, vmem_cap = _pick_tiles(M, dim, hidden, itemsize)

    # Zero-pad tokens to a multiple of tm so padded rows are well-defined
    # (no uninitialized data through erf / matmul); output is sliced back.
    M_pad = _round_up(M, tm)
    if M_pad != M:
        x2d = jnp.pad(x2d, ((0, M_pad - M), (0, 0)))

    grid = (M_pad // tm, hidden // th)

    cost = pl.CostEstimate(
        flops=4 * M * dim * hidden,
        transcendentals=M * hidden,
        bytes_accessed=(2 * M * dim * itemsize
                        + grid[0] * 2 * dim * hidden * itemsize),  # weights re-streamed per M tile
    )
    vmem_limit = max(32 << 20, min(int(ws_bytes) + (16 << 20),
                                   int(vmem_cap * 0.9)))

    out2d = pl.pallas_call(
        partial(_mlp_kernel, gelu_tanh=gelu_tanh),
        out_shape=jax.ShapeDtypeStruct((M_pad, dim), out_dtype),
        grid_spec=pltpu.PrefetchScalarGridSpec(
            num_scalar_prefetch=0,
            grid=grid,
            in_specs=[
                pl.BlockSpec((tm, dim), lambda i, h: (i, 0)),   # x tile
                pl.BlockSpec((dim, th), lambda i, h: (0, h)),   # fc1 slice (in, out)
                pl.BlockSpec((th, dim), lambda i, h: (h, 0)),   # fc2 slice (in, out)
            ],
            out_specs=pl.BlockSpec((tm, dim), lambda i, h: (i, 0)),
            scratch_shapes=[pltpu.VMEM((tm, dim), jnp.float32)],
        ),
        compiler_params=pltpu.CompilerParams(
            dimension_semantics=("parallel", "arbitrary"),
            vmem_limit_bytes=vmem_limit,
        ),
        cost_estimate=cost,
    )(x2d, w1t, w2t)

    return out2d[:M].reshape(batch, seq, dim)


def mlp_reference(x, w1, w2):
    h = jnp.einsum("bsd,hd->bsh", x, w1, precision=lax.Precision.HIGHEST)
    g = 0.5 * h * (1.0 + lax.erf(h * jnp.float32(_INV_SQRT2)))
    return jnp.einsum("bsh,dh->bsd", g, w2, precision=lax.Precision.HIGHEST)


if __name__ == "__main__":
    batch, seq, dim, hidden = 2, 8, 32, 64
    key = jax.random.PRNGKey(0)
    kx, k1, k2 = jax.random.split(key, 3)

    x = jax.random.normal(kx, (batch, seq, dim), dtype=jnp.float32)
    # Deterministic "Kaiming-ish" init, PyTorch weight layout (out, in).
    w1 = jax.random.normal(k1, (hidden, dim), dtype=jnp.float32) * (1.0 / math.sqrt(dim))
    w2 = jax.random.normal(k2, (dim, hidden), dtype=jnp.float32) * (1.0 / math.sqrt(hidden))

    out = mlp_pallas(x, w1, w2)
    jax.block_until_ready(out)

    ref = mlp_reference(x, w1, w2)
    assert out.shape == (batch, seq, dim)
    assert jnp.allclose(out, ref, atol=1e-4, rtol=1e-4), "mismatch vs reference"

    print("KERNEL_OK")
</pallas_src>

<mosaic_0001>
module attributes {stable_mosaic.version = 11 : i64} {
  func.func @_mlp_kernel(%arg0: i32, %arg1: i32, %arg2: memref<16x32xf32, #tpu.memory_space<vmem>>, %arg3: memref<32x64xf32, #tpu.memory_space<vmem>>, %arg4: memref<64x32xf32, #tpu.memory_space<vmem>>, %arg5: memref<16x32xf32, #tpu.memory_space<vmem>>, %arg6: memref<16x32xf32, #tpu.memory_space<vmem>>) attributes {dimension_semantics = [#tpu.dimension_semantics<parallel>, #tpu.dimension_semantics<arbitrary>], iteration_bounds = array<i64: 1, 1>, scalar_prefetch = 0 : i64, scratch_operands = 1 : i64, tpu.core_type = #tpu.core_type<tc>, window_params = [{transform_indices = @transform_0, window_bounds = array<i64: 16, 32>}, {transform_indices = @transform_1, window_bounds = array<i64: 32, 64>}, {transform_indices = @transform_2, window_bounds = array<i64: 64, 32>}, {transform_indices = @transform_3, window_bounds = array<i64: 16, 32>}]} {
    %c0_i32 = arith.constant 0 : i32
    %0 = arith.cmpi eq, %arg1, %c0_i32 : i32
    %1 = arith.extui %0 : i1 to i32
    %c0_i32_0 = arith.constant 0 : i32
    %2 = arith.cmpi ne, %1, %c0_i32_0 : i32
    scf.if %2 {
      %cst_16 = arith.constant 0.000000e+00 : f32
      %22 = vector.broadcast %cst_16 : f32 to vector<16x32xf32>
      %c0_17 = arith.constant 0 : index
      %c0_18 = arith.constant 0 : index
      %23 = vector.load %arg6[%c0_17, %c0_18] : memref<16x32xf32, #tpu.memory_space<vmem>>, vector<16x32xf32>
      tpu.vector_store %arg6[%c0_17, %c0_18], %22 {strides = array<i32>} : memref<16x32xf32, #tpu.memory_space<vmem>>, vector<16x32xf32>,
    } else {
    }
    %c0 = arith.constant 0 : index
    %c0_1 = arith.constant 0 : index
    %3 = vector.load %arg2[%c0, %c0_1] : memref<16x32xf32, #tpu.memory_space<vmem>>, vector<16x32xf32>
    %c0_2 = arith.constant 0 : index
    %c0_3 = arith.constant 0 : index
    %4 = vector.load %arg3[%c0_2, %c0_3] : memref<32x64xf32, #tpu.memory_space<vmem>>, vector<32x64xf32>
    %cst = arith.constant dense<0.000000e+00> : vector<16x64xf32>
    %5 = tpu.matmul %3, %4, %cst {dimension_numbers = #tpu.dot_dimension_numbers<[1], [0], [0], [1], [0, 0, 1, 1], [], []>} : vector<16x32xf32>, vector<32x64xf32>, vector<16x64xf32> -> vector<16x64xf32>
    %cst_4 = arith.constant 5.000000e-01 : f32
    %6 = vector.broadcast %cst_4 : f32 to vector<16x64xf32>
    %7 = arith.mulf %6, %5 : vector<16x64xf32>
    %cst_5 = arith.constant 0.707106769 : f32
    %8 = vector.broadcast %cst_5 : f32 to vector<16x64xf32>
    %9 = arith.mulf %5, %8 : vector<16x64xf32>
    %10 = math.erf %9 : vector<16x64xf32>
    %cst_6 = arith.constant 1.000000e+00 : f32
    %11 = vector.broadcast %cst_6 : f32 to vector<16x64xf32>
    %12 = arith.addf %11, %10 : vector<16x64xf32>
    %13 = arith.mulf %7, %12 : vector<16x64xf32>
    %c0_7 = arith.constant 0 : index
    %c0_8 = arith.constant 0 : index
    %14 = vector.load %arg6[%c0_7, %c0_8] : memref<16x32xf32, #tpu.memory_space<vmem>>, vector<16x32xf32>
    %c0_9 = arith.constant 0 : index
    %c0_10 = arith.constant 0 : index
    %15 = vector.load %arg4[%c0_9, %c0_10] : memref<64x32xf32, #tpu.memory_space<vmem>>, vector<64x32xf32>
    %cst_11 = arith.constant dense<0.000000e+00> : vector<16x32xf32>
    %16 = tpu.matmul %13, %15, %cst_11 {dimension_numbers = #tpu.dot_dimension_numbers<[1], [0], [0], [1], [0, 0, 1, 1], [], []>} : vector<16x64xf32>, vector<64x32xf32>, vector<16x32xf32> -> vector<16x32xf32>
    %17 = arith.addf %14, %16 : vector<16x32xf32>
    %c0_12 = arith.constant 0 : index
    %c0_13 = arith.constant 0 : index
    %18 = vector.load %arg6[%c0_12, %c0_13] : memref<16x32xf32, #tpu.memory_space<vmem>>, vector<16x32xf32>
    tpu.vector_store %arg6[%c0_12, %c0_13], %17 {strides = array<i32>} : memref<16x32xf32, #tpu.memory_space<vmem>>, vector<16x32xf32>,
    %c0_i32_14 = arith.constant 0 : i32
    %19 = arith.cmpi eq, %arg1, %c0_i32_14 : i32
    %20 = arith.extui %19 : i1 to i32
    %c0_i32_15 = arith.constant 0 : i32
    %21 = arith.cmpi ne, %20, %c0_i32_15 : i32
    scf.if %21 {
      %c0_16 = arith.constant 0 : index
      %c0_17 = arith.constant 0 : index
      %22 = vector.load %arg6[%c0_16, %c0_17] : memref<16x32xf32, #tpu.memory_space<vmem>>, vector<16x32xf32>
      %c0_18 = arith.constant 0 : index
      %c0_19 = arith.constant 0 : index
      %23 = vector.load %arg5[%c0_18, %c0_19] : memref<16x32xf32, #tpu.memory_space<vmem>>, vector<16x32xf32>
      tpu.vector_store %arg5[%c0_18, %c0_19], %22 {strides = array<i32>} : memref<16x32xf32, #tpu.memory_space<vmem>>, vector<16x32xf32>,
    } else {
    }
    return
  }
  func.func @transform_0(%arg0: i32, %arg1: i32) -> (i32, i32) {
    %c0_i32 = arith.constant 0 : i32
    %c0_i32_0 = arith.constant 0 : i32
    return %arg0, %c0_i32 : i32, i32
  }
  func.func @transform_1(%arg0: i32, %arg1: i32) -> (i32, i32) {
    %c0_i32 = arith.constant 0 : i32
    %c0_i32_0 = arith.constant 0 : i32
    return %c0_i32, %arg1 : i32, i32
  }
  func.func @transform_2(%arg0: i32, %arg1: i32) -> (i32, i32) {
    %c0_i32 = arith.constant 0 : i32
    %c0_i32_0 = arith.constant 0 : i32
    return %arg1, %c0_i32 : i32, i32
  }
  func.func @transform_3(%arg0: i32, %arg1: i32) -> (i32, i32) {
    %c0_i32 = arith.constant 0 : i32
    %c0_i32_0 = arith.constant 0 : i32
    return %arg0, %c0_i32 : i32, i32
  }
}

</mosaic_0001>

<llo_original>
// kernel: mlp_pallas.1
$region0: #{mlp_pallas.1}
  #allocation0 [shape = 'u32[]', space=smem, size = 0x4, offset = 0x4, fixed_abs, tag = 'smem constant byte address 0x4 - core index']
  #allocation1 [shape = 'u32[144,128]{1,0:T(1,128)}', space=vmem, size = 0x12000, scoped, tag = 'internal scratch']
  #allocation2 [shape = 'f32[16,32]{1,0:T(8,128)}', space=vmem, size = 0x2000, scoped, tag = 'scratch operand']
  %s0 = inlined_call_operand.vmem [shape: f32[16,32], index: 0, kind: input, shape index: {}]
  %s1 = inlined_call_operand.vmem [shape: f32[32,64], index: 1, kind: input, shape index: {}]
  %s2 = inlined_call_operand.vmem [shape: f32[64,32], index: 2, kind: input, shape index: {}]
  %s3 = inlined_call_operand.hbm [shape: f32[16,32], index: 3, kind: output, shape index: {}]
  %s4 = sld [smem:[#allocation0]]
  $region30: #{mlp_pallas.1} parent=0
    _
  %s6 = ssub.s32 1, %s4
  %s7 = scalar_select 0, %s6, %s4
  $region1: #{mlp_pallas.1} parent=0
    #allocation3 [shape = 'u8[8192]{0}', space=vmem, size = 0x2000, scoped, tag = 'output window, operand 0, single buffered']
    #allocation4 [shape = 's32[1]{0}', space=sflag, size = 0x4, scoped, tag = 'scoped memory for mlp_pallas.1']
    %8 = vsyncpa [#allocation4], 0
    // Predicated region
    $region2: #{mlp_pallas.1} parent=1 // pred_check
      _
    $region3: #{mlp_pallas.1} parent=1 // pred_check_branch
      %10 = sbr.rel (0) target = $region5
    $region4: #{mlp_pallas.1} parent=1 // pred_region
      _
    $region5: #{mlp_pallas.1} parent=1 // pred_fallthru
      _
    // Predicated region
    $region6: #{mlp_pallas.1} parent=1 // pred_check
      _
    $region7: #{mlp_pallas.1} parent=1 // pred_check_branch
      %12 = sbr.rel (0) target = $region9
    $region8: #{mlp_pallas.1} parent=1 // pred_region
      _
    $region9: #{mlp_pallas.1} parent=1 // pred_fallthru
      _
    // Predicated region
    $region10: #{mlp_pallas.1} parent=1 // pred_check
      _
    $region11: #{mlp_pallas.1} parent=1 // pred_check_branch
      %14 = sbr.rel (0) target = $region13
    $region12: #{mlp_pallas.1} parent=1 // pred_region
      _
    $region13: #{mlp_pallas.1} parent=1 // pred_fallthru
      _
    %p15 = scmp.eq.s32.totalorder 0, 0
    // Predicated region
    $region14: #{mlp_pallas.1} parent=1 // pred_check
      %p16 = pneg %p15
    $region15: #{mlp_pallas.1} parent=1 // pred_check_branch
      %18 = sbr.rel (%p16) target = $region17
    $region16: #{mlp_pallas.1} parent=1 // pred_region
      %vm19 = vcmask 261120
      %20 = vst.msk [vmem:[#allocation2] sm:$0xff] %vm19, 0.0
      %21 = vst.msk [vmem:[#allocation2 + $0x8] sm:$0xff] %vm19, 0.0
    $region17: #{mlp_pallas.1} parent=1 // pred_fallthru
      _
    %v22 = vld [vmem:[%s0] sm:$0xff]
    %v23 = vld [vmem:[%s0 + $0x8] sm:$0xff]
    %v24 = vld [vmem:[%s1] sm:$0xff]
    %v25 = vld [vmem:[%s1 + $0x8] sm:$0xff]
    %v26 = vld [vmem:[%s1 + $0x10] sm:$0xff]
    %v27 = vld [vmem:[%s1 + $0x18] sm:$0xff]
    %vm28 = vcmask 261120
    %v30 = vsel %vm28, %v22, 0
    %v33 = vsel %vm28, %v23, 0
    %35 = vmatprep.subr.mxu0 0.0
    %36 = vmatpush1.msra.mxu0 %v24
    %37 = vmatprep.subr.mxu0 0.0
    %38 = vmatpush1.msra.mxu0 %v25
    %39 = vmatprep.subr.mxu0 0.0
    %40 = vmatpush1.msra.mxu0 %v26
    %41 = vmatprep.subr.mxu0 0.0
    %42 = vmatpush1.msra.mxu0 %v27
    %43 = vmatprep.subr.mxu0 0.0
    %44 = vmatpush1.msra.mxu0 0.0
    %45 = vmatprep.subr.mxu0 0.0
    %46 = vmatpush1.msra.mxu0 0.0
    %47 = vmatprep.subr.mxu0 0.0
    %48 = vmatpush1.msra.mxu0 0.0
    %49 = vmatprep.subr.mxu0 0.0
    %50 = vmatpush1.msra.mxu0 0.0
    %51 = vmatprep.subr.mxu0 0.0
    %52 = vmatpush1.msra.mxu0 0.0
    %53 = vmatprep.subr.mxu0 0.0
    %54 = vmatpush1.msra.mxu0 0.0
    %55 = vmatprep.subr.mxu0 0.0
    %56 = vmatpush1.msra.mxu0 0.0
    %57 = vmatprep.subr.mxu0 0.0
    %58 = vmatpush1.msra.mxu0 0.0
    %59 = vmatprep.subr.mxu0 0.0
    %60 = vmatpush1.msra.mxu0 0.0
    %61 = vmatprep.subr.mxu0 0.0
    %62 = vmatpush1.msra.mxu0 0.0
    %63 = vmatprep.subr.mxu0 0.0
    %64 = vmatpush1.msra.mxu0 0.0
    %65 = vmatprep.subr.mxu0 0.0
    %66 = vmatpush1.msra.mxu0 0.0
    %67 = vmatprep.subr.mxu0 0.0
    %68 = vmatpush1.msra.mxu0 0.0
    %69 = vmatprep.subr.mxu0 0.0
    %70 = vmatpush1.msra.mxu0 0.0
    %71 = vmatprep.subr.mxu0 0.0
    %72 = vmatpush1.msra.mxu0 0.0
    %73 = vmatprep.subr.mxu0 0.0
    %74 = vmatpush1.msra.mxu0 0.0
    %75 = vmatprep.subr.mxu0 0.0
    %76 = vmatpush1.msra.mxu0 0.0
    %77 = vmatprep.subr.mxu0 0.0
    %78 = vmatpush1.msra.mxu0 0.0
    %79 = vmatprep.subr.mxu0 0.0
    %80 = vmatpush1.msra.mxu0 0.0
    %81 = vmatprep.subr.mxu0 0.0
    %82 = vmatpush1.msra.mxu0 0.0
    %83 = vmatprep.subr.mxu0 0.0
    %84 = vmatpush1.msra.mxu0 0.0
    %85 = vmatprep.subr.mxu0 0.0
    %86 = vmatpush1.msra.mxu0 0.0
    %87 = vmatprep.subr.mxu0 0.0
    %88 = vmatpush1.msra.mxu0 0.0
    %89 = vmatprep.subr.mxu0 0.0
    %90 = vmatpush1.msra.mxu0 0.0
    %91 = vmatprep.subr.mxu0 0.0
    %92 = vmatpush1.msra.mxu0 0.0
    %93 = vmatprep.subr.mxu0 0.0
    %94 = vmatpush1.msra.mxu0 0.0
    %95 = vmatprep.subr.mxu0 0.0
    %96 = vmatpush1.msra.mxu0 0.0
    %97 = vmatprep.subr.mxu0 0.0
    %98 = vmatpush1.msra.mxu0 0.0
    %99 = vmatprep.mubr.f32.mxu0 0.0
    %100 = vmatmul.mubr.f32.gmra.mrb[0].mxu0 %v30
    %v101 = vpop.f32.mrb[0].mxu0
    %v102 = vadd.f32 0.0, %v101
    %v103 = vpop.f32.mrb[0].mxu0
    %104 = vmatprep.mubr.f32.mxu0 0.0
    %105 = vmatmul.mubr.f32.gmra.mrb[0].mxu0 %v33
    %v106 = vpop.f32.mrb[0].mxu0
    %v107 = vadd.f32 0.0, %v106
    %v108 = vpop.f32.mrb[0].mxu0
    %109 = vdwg.mxu0
    %v110 = vmul.f32 %v102, 0.5
    %v111 = vmul.f32 %v107, 0.5
    %v112 = vmul.f32 %v102, 0.70710677
    %v113 = vmul.f32 %v107, 0.70710677
    %v114 = verf.f32.pop %v112
    %v115 = verf.f32.pop %v113
    %v116 = vadd.f32 %v114, 1.0
    %v117 = vadd.f32 %v115, 1.0
    %v118 = vmul.f32 %v110, %v116
    %v119 = vmul.f32 %v111, %v117
    %v120 = vld [vmem:[#allocation2] sm:$0xff]
    %v121 = vld [vmem:[#allocation2 + $0x8] sm:$0xff]
    %v122 = vld [vmem:[%s2] sm:$0xff]
    %v123 = vld [vmem:[%s2 + $0x8] sm:$0xff]
    %v124 = vld [vmem:[%s2 + $0x10] sm:$0xff]
    %v125 = vld [vmem:[%s2 + $0x18] sm:$0xff]
    %v126 = vld [vmem:[%s2 + $0x20] sm:$0xff]
    %v127 = vld [vmem:[%s2 + $0x28] sm:$0xff]
    %v128 = vld [vmem:[%s2 + $0x30] sm:$0xff]
    %v129 = vld [vmem:[%s2 + $0x38] sm:$0xff]
    %vm130 = vcmask 523264
    %v132 = vsel %vm130, %v118, 0
    %v135 = vsel %vm130, %v119, 0
    %137 = vmatprep.subr.mxu0 0.0
    %138 = vmatpush1.msra.mxu0 %v122
    %139 = vmatprep.subr.mxu0 0.0
    %140 = vmatpush1.msra.mxu0 %v123
    %141 = vmatprep.subr.mxu0 0.0
    %142 = vmatpush1.msra.mxu0 %v124
    %143 = vmatprep.subr.mxu0 0.0
    %144 = vmatpush1.msra.mxu0 %v125
    %145 = vmatprep.subr.mxu0 0.0
    %146 = vmatpush1.msra.mxu0 %v126
    %147 = vmatprep.subr.mxu0 0.0
    %148 = vmatpush1.msra.mxu0 %v127
    %149 = vmatprep.subr.mxu0 0.0
    %150 = vmatpush1.msra.mxu0 %v128
    %151 = vmatprep.subr.mxu0 0.0
    %152 = vmatpush1.msra.mxu0 %v129
    %153 = vmatprep.subr.mxu0 0.0
    %154 = vmatpush1.msra.mxu0 0.0
    %155 = vmatprep.subr.mxu0 0.0
    %156 = vmatpush1.msra.mxu0 0.0
    %157 = vmatprep.subr.mxu0 0.0
    %158 = vmatpush1.msra.mxu0 0.0
    %159 = vmatprep.subr.mxu0 0.0
    %160 = vmatpush1.msra.mxu0 0.0
    %161 = vmatprep.subr.mxu0 0.0
    %162 = vmatpush1.msra.mxu0 0.0
    %163 = vmatprep.subr.mxu0 0.0
    %164 = vmatpush1.msra.mxu0 0.0
    %165 = vmatprep.subr.mxu0 0.0
    %166 = vmatpush1.msra.mxu0 0.0
    %167 = vmatprep.subr.mxu0 0.0
    %168 = vmatpush1.msra.mxu0 0.0
    %169 = vmatprep.subr.mxu0 0.0
    %170 = vmatpush1.msra.mxu0 0.0
    %171 = vmatprep.subr.mxu0 0.0
    %172 = vmatpush1.msra.mxu0 0.0
    %173 = vmatprep.subr.mxu0 0.0
    %174 = vmatpush1.msra.mxu0 0.0
    %175 = vmatprep.subr.mxu0 0.0
    %176 = vmatpush1.msra.mxu0 0.0
    %177 = vmatprep.subr.mxu0 0.0
    %178 = vmatpush1.msra.mxu0 0.0
    %179 = vmatprep.subr.mxu0 0.0
    %180 = vmatpush1.msra.mxu0 0.0
    %181 = vmatprep.subr.mxu0 0.0
    %182 = vmatpush1.msra.mxu0 0.0
    %183 = vmatprep.subr.mxu0 0.0
    %184 = vmatpush1.msra.mxu0 0.0
    %185 = vmatprep.subr.mxu0 0.0
    %186 = vmatpush1.msra.mxu0 0.0
    %187 = vmatprep.subr.mxu0 0.0
    %188 = vmatpush1.msra.mxu0 0.0
    %189 = vmatprep.subr.mxu0 0.0
    %190 = vmatpush1.msra.mxu0 0.0
    %191 = vmatprep.subr.mxu0 0.0
    %192 = vmatpush1.msra.mxu0 0.0
    %193 = vmatprep.subr.mxu0 0.0
    %194 = vmatpush1.msra.mxu0 0.0
    %195 = vmatprep.subr.mxu0 0.0
    %196 = vmatpush1.msra.mxu0 0.0
    %197 = vmatprep.subr.mxu0 0.0
    %198 = vmatpush1.msra.mxu0 0.0
    %199 = vmatprep.subr.mxu0 0.0
    %200 = vmatpush1.msra.mxu0 0.0
    %201 = vmatprep.mubr.f32.mxu0 0.0
    %202 = vmatmul.mubr.f32.gmra.mrb[0].mxu0 %v132
    %v203 = vpop.f32.mrb[0].mxu0
    %v204 = vadd.f32 0.0, %v203
    %v205 = vpop.f32.mrb[0].mxu0
    %206 = vmatprep.mubr.f32.mxu0 0.0
    %207 = vmatmul.mubr.f32.gmra.mrb[0].mxu0 %v135
    %v208 = vpop.f32.mrb[0].mxu0
    %v209 = vadd.f32 0.0, %v208
    %v210 = vpop.f32.mrb[0].mxu0
    %211 = vdwg.mxu0
    %v212 = vadd.f32 %v120, %v204
    %v213 = vadd.f32 %v121, %v209
    %214 = vst.msk [vmem:[#allocation2] sm:$0xff] %vm28, %v212
    %215 = vst.msk [vmem:[#allocation2 + $0x8] sm:$0xff] %vm28, %v213
    // Predicated region
    $region18: #{mlp_pallas.1} parent=1 // pred_check
      %p216 = pneg %p15
    $region19: #{mlp_pallas.1} parent=1 // pred_check_branch
      %218 = sbr.rel (%p216) target = $region21
    $region20: #{mlp_pallas.1} parent=1 // pred_region
      %v219 = vld [vmem:[#allocation2] sm:$0xff]
      %v220 = vld [vmem:[#allocation2 + $0x8] sm:$0xff]
      %221 = vst.msk [vmem:[#allocation3] sm:$0xff] %vm28, %v219
      %222 = vst.msk [vmem:[#allocation3 + $0x8] sm:$0xff] %vm28, %v220
    $region21: #{mlp_pallas.1} parent=1 // pred_fallthru
      _
    // Predicated region
    $region22: #{mlp_pallas.1} parent=1 // pred_check
      _
    $region23: #{mlp_pallas.1} parent=1 // pred_check_branch
      %224 = sbr.rel (0) target = $region25
    $region24: #{mlp_pallas.1} parent=1 // pred_region
      %s226 = ssub.s32 256, 256
      %227 = vsyncadd [#allocation4], %s226
      %s228 = sshll.u32 [#allocation3], 4
      %s229 = int_to_ptr.vmem [resolvable:$true] %s228
      %234 = dma.vmem_to_hbm [thread:$0]  %s229, 256, %s3, [#allocation4], 128, 128, 8
    $region25: #{mlp_pallas.1} parent=1 // pred_fallthru
      _
    // Predicated region
    $region26: #{mlp_pallas.1} parent=1 // pred_check
      _
    $region27: #{mlp_pallas.1} parent=1 // pred_check_branch
      %236 = sbr.rel (0) target = $region29
    $region28: #{mlp_pallas.1} parent=1 // pred_region
      %237 = dma.done [#allocation4], 256
    $region29: #{mlp_pallas.1} parent=1 // pred_fallthru
      _
    %238 = vsyncpa [#allocation4], 1

</llo_original>
